<compile_context>
chip_gen: v5e
topology: v5e:2x2
jax: 0.10.0
libtpu: 0.0.40
codegen_flags: <defaults>
</compile_context>

<pallas_src>
from functools import partial

import jax
import jax.numpy as jnp
from jax.experimental import pallas as pl
from jax.experimental.pallas import tpu as pltpu

NEG_MARGIN = 0.5
POS_MARGIN = 0.0


def _round_up(x, m):
    return ((x + m - 1) // m) * m


def _contrastive_partials_kernel(ea_ref, ebt_ref, sqa_ref, sqb_ref,
                                 la_ref, lb_ref, out_ref,
                                 ps_ref, pc_ref, ns_ref, nc_ref,
                                 *, ta, tn, pos_margin, neg_margin):
    i = pl.program_id(0)          # anchor-row block   ("parallel")
    j = pl.program_id(1)          # comparison block   ("arbitrary", inner)

    @pl.when(j == 0)
    def _():
        ps_ref[...] = jnp.zeros_like(ps_ref)
        pc_ref[...] = jnp.zeros_like(pc_ref)
        ns_ref[...] = jnp.zeros_like(ns_ref)
        nc_ref[...] = jnp.zeros_like(nc_ref)

    # Gram block on the MXU: (TA, D) x (D, TN), f32 accumulation.  Comparison
    # embeddings are pre-transposed in the wrapper -> canonical (M,K)x(K,N).
    g = jax.lax.dot_general(ea_ref[...], ebt_ref[...],
                            (((1,), (0,)), ((), ())),
                            preferred_element_type=jnp.float32)        # (TA, TN)

    sq_a = sqa_ref[...]                                                # (TA, 1)
    sq_b = sqb_ref[...]                                                # (1, TN)
    d = jnp.sqrt(jnp.maximum(sq_a + sq_b - 2.0 * g, 0.0))              # (TA, TN)

    same = la_ref[...] == lb_ref[...]                                  # (TA, TN)
    # Only mask needed: exclude i == j from the positive set (d_ii can be a few
    # ulps above 0 due to summation-order differences).  Padded pairs are all
    # negatives with d >= neg_margin by construction (wrapper), so they
    # contribute exactly 0 loss and 0 count; the diagonal never enters the
    # negative set because labels[i] == labels[i].
    row_ids = i * ta + jax.lax.broadcasted_iota(jnp.int32, (ta, tn), 0)
    col_ids = j * tn + jax.lax.broadcasted_iota(jnp.int32, (ta, tn), 1)
    pos_mask = jnp.logical_and(same, row_ids != col_ids)

    pos_loss = jnp.where(pos_mask, jnp.maximum(d - pos_margin, 0.0), 0.0)
    neg_loss = jnp.where(same, 0.0, jnp.maximum(neg_margin - d, 0.0))

    # Vector-form accumulation: one sublane reduce per quantity per step.
    ps_ref[...] = ps_ref[...] + jnp.sum(pos_loss, axis=0, keepdims=True)
    pc_ref[...] = pc_ref[...] + jnp.sum((pos_loss > 0.0).astype(jnp.float32),
                                        axis=0, keepdims=True)
    ns_ref[...] = ns_ref[...] + jnp.sum(neg_loss, axis=0, keepdims=True)
    nc_ref[...] = nc_ref[...] + jnp.sum((neg_loss > 0.0).astype(jnp.float32),
                                        axis=0, keepdims=True)

    # Epilogue only on the last column step of this row block.
    @pl.when(j == pl.num_programs(1) - 1)
    def _():
        sp = jnp.sum(ps_ref[...])
        cp = jnp.sum(pc_ref[...])
        sn = jnp.sum(ns_ref[...])
        cn = jnp.sum(nc_ref[...])
        sel = jax.lax.broadcasted_iota(jnp.int32, (1, 4, 128), 1)
        out_ref[...] = (jnp.where(sel == 0, sp, 0.0)
                        + jnp.where(sel == 1, cp, 0.0)
                        + jnp.where(sel == 2, sn, 0.0)
                        + jnp.where(sel == 3, cn, 0.0))


def contrastive_loss(embeddings, labels, neg_margin=NEG_MARGIN,
                     pos_margin=POS_MARGIN, *, block_rows=256, block_cols=1024,
                     use_bf16_matmul=False):
    """embeddings: (N, D) float, labels: (N,) int -> scalar f32 loss."""
    embeddings = jnp.asarray(embeddings, jnp.float32)
    labels = jnp.asarray(labels, jnp.int32)
    n, d = embeddings.shape

    # ---- grid-invariant work hoisted out of the kernel (done once in XLA) ---
    # torch.nn.functional.normalize(p=2, eps=1e-12)
    norms = jnp.sqrt(jnp.sum(embeddings * embeddings, axis=-1, keepdims=True))
    emb_n = embeddings / jnp.maximum(norms, 1e-12)
    sq = jnp.sum(emb_n * emb_n, axis=-1)          # 1.0 (0.0 for zero rows)

    # ---- tile / padding geometry -------------------------------------------
    d_pad = _round_up(d, 128)                      # 128-aligned contraction dim
    tn = min(max(128, _round_up(block_cols, 128)), _round_up(n, 128))
    n_pad = _round_up(n, tn)                       # tn | n_pad, 128 | n_pad
    ta = 256 if (block_rows >= 256 and n_pad % 256 == 0) else 128
    n_row, n_col = n_pad // ta, n_pad // tn

    # Padded entries: zero embeddings, a large squared norm, and distinct
    # labels strictly below every real label.  Every padded pair is then a
    # negative pair with d >= sqrt(pad_sq) >= neg_margin -> loss 0, count 0,
    # so no validity mask is needed in the kernel.
    pad_sq = max(4.0, float(neg_margin) * float(neg_margin) + 1.0)
    emb_p = jnp.zeros((n_pad, d_pad), jnp.float32).at[:n, :d].set(emb_n)
    if n_pad != n:
        sq_p = jnp.full((n_pad,), pad_sq, jnp.float32).at[:n].set(sq)
        pad_lab = (jnp.min(labels) - 1) - jnp.arange(n_pad - n, dtype=jnp.int32)
        lab_p = jnp.concatenate([labels, pad_lab])
    else:
        sq_p, lab_p = sq, labels

    ea = emb_p                                     # (N_pad, D_pad) anchors
    ebt = emb_p.T                                  # (D_pad, N_pad) pre-transposed
    if use_bf16_matmul:
        # Opt-in accuracy tradeoff (~1e-3 distance perturbation) for ~3-4x MXU.
        ea = ea.astype(jnp.bfloat16)
        ebt = ebt.astype(jnp.bfloat16)
    sq_col = sq_p.reshape(n_pad, 1)
    sq_row = sq_p.reshape(1, n_pad)
    lab_col = lab_p.reshape(n_pad, 1)
    lab_row = lab_p.reshape(1, n_pad)

    # ---- VMEM budget / cost estimate ---------------------------------------
    elt = 2 if use_bf16_matmul else 4
    per_buf = ((ta * d_pad + d_pad * tn) * elt          # embedding blocks
               + 2 * (ta + tn) * 4                      # sq + label blocks
               + 4 * 128 * 4)                           # output block
    temps = 10 * ta * tn * 4                            # live (TA,TN) slabs
    scratch = 4 * 8 * tn * 4                            # (1,TN) accumulators
    vmem_limit = int(min(40 * 1024 * 1024,
                         max(16 * 1024 * 1024,
                             2 * per_buf + temps + scratch + (4 << 20))))

    cost = pl.CostEstimate(
        flops=2 * n_pad * n_pad * d_pad + 16 * n_pad * n_pad,
        transcendentals=n_pad * n_pad,
        bytes_accessed=(n_pad * d_pad * elt               # anchors (once)
                        + n_row * n_pad * d_pad * elt     # comparison, per row block
                        + 4 * n_pad * 4                   # sq + labels
                        + n_row * 4 * 128 * 4),           # partial outputs
    )

    grid_spec = pltpu.PrefetchScalarGridSpec(
        num_scalar_prefetch=0,
        grid=(n_row, n_col),
        in_specs=[
            pl.BlockSpec((ta, d_pad), lambda i, j: (i, 0)),   # anchor slab
            pl.BlockSpec((d_pad, tn), lambda i, j: (0, j)),   # comparison slab (T)
            pl.BlockSpec((ta, 1), lambda i, j: (i, 0)),       # ||e_a||^2
            pl.BlockSpec((1, tn), lambda i, j: (0, j)),       # ||e_b||^2
            pl.BlockSpec((ta, 1), lambda i, j: (i, 0)),       # anchor labels
            pl.BlockSpec((1, tn), lambda i, j: (0, j)),       # comparison labels
        ],
        out_specs=pl.BlockSpec((1, 4, 128), lambda i, j: (i, 0, 0)),
        scratch_shapes=[pltpu.VMEM((1, tn), jnp.float32)] * 4,
    )

    partials = pl.pallas_call(
        partial(_contrastive_partials_kernel, ta=ta, tn=tn,
                pos_margin=float(pos_margin), neg_margin=float(neg_margin)),
        out_shape=jax.ShapeDtypeStruct((n_row, 4, 128), jnp.float32),
        grid_spec=grid_spec,
        compiler_params=pltpu.CompilerParams(
            dimension_semantics=("parallel", "arbitrary"),
            vmem_limit_bytes=vmem_limit,
        ),
        cost_estimate=cost,
    )(ea, ebt, sq_col, sq_row, lab_col, lab_row)

    # Tiny cross-row-block combine + AvgNonZeroReducer epilogue (XLA).
    ps = jnp.sum(partials[:, 0, 0])
    pc = jnp.sum(partials[:, 1, 0])
    ns = jnp.sum(partials[:, 2, 0])
    nc = jnp.sum(partials[:, 3, 0])
    lp = jnp.where(pc > 0.0, ps / jnp.maximum(pc, 1.0), 0.0)
    ln = jnp.where(nc > 0.0, ns / jnp.maximum(nc, 1.0), 0.0)
    return lp + ln


if __name__ == "__main__":
    key = jax.random.PRNGKey(0)
    k_emb, k_lab = jax.random.split(key)
    N, D = 8, 32
    embeddings = jax.random.normal(k_emb, (N, D), dtype=jnp.float32)
    labels = jax.random.randint(k_lab, (N,), 0, 3, dtype=jnp.int32)

    loss = contrastive_loss(embeddings, labels, neg_margin=0.5)
    jax.block_until_ready(loss)
    print("KERNEL_OK")
</pallas_src>

<mosaic_0001>
module attributes {stable_mosaic.version = 11 : i64} {
  func.func @_contrastive_partials_kernel(%arg0: i32, %arg1: i32, %arg2: memref<128x128xf32, #tpu.memory_space<vmem>>, %arg3: memref<128x128xf32, #tpu.memory_space<vmem>>, %arg4: memref<128x1xf32, #tpu.memory_space<vmem>>, %arg5: memref<1x128xf32, #tpu.memory_space<vmem>>, %arg6: memref<128x1xi32, #tpu.memory_space<vmem>>, %arg7: memref<1x128xi32, #tpu.memory_space<vmem>>, %arg8: memref<1x4x128xf32, #tpu.memory_space<vmem>>, %arg9: memref<1x128xf32, #tpu.memory_space<vmem>>, %arg10: memref<1x128xf32, #tpu.memory_space<vmem>>, %arg11: memref<1x128xf32, #tpu.memory_space<vmem>>, %arg12: memref<1x128xf32, #tpu.memory_space<vmem>>) attributes {dimension_semantics = [#tpu.dimension_semantics<parallel>, #tpu.dimension_semantics<arbitrary>], iteration_bounds = array<i64: 1, 1>, scalar_prefetch = 0 : i64, scratch_operands = 4 : i64, tpu.core_type = #tpu.core_type<tc>, window_params = [{transform_indices = @transform_0, window_bounds = array<i64: 128, 128>}, {transform_indices = @transform_1, window_bounds = array<i64: 128, 128>}, {transform_indices = @transform_2, window_bounds = array<i64: 128, 1>}, {transform_indices = @transform_3, window_bounds = array<i64: 1, 128>}, {transform_indices = @transform_4, window_bounds = array<i64: 128, 1>}, {transform_indices = @transform_5, window_bounds = array<i64: 1, 128>}, {transform_indices = @transform_6, window_bounds = array<i64: 1, 4, 128>}]} {
    %c0_i32 = arith.constant 0 : i32
    %0 = arith.cmpi eq, %arg1, %c0_i32 : i32
    %1 = arith.extui %0 : i1 to i32
    %c0_i32_0 = arith.constant 0 : i32
    %2 = arith.cmpi ne, %1, %c0_i32_0 : i32
    scf.if %2 {
      %cst_45 = arith.constant 0.000000e+00 : f32
      %75 = vector.broadcast %cst_45 : f32 to vector<1x128xf32>
      %c0_46 = arith.constant 0 : index
      %c0_47 = arith.constant 0 : index
      %76 = vector.load %arg9[%c0_46, %c0_47] : memref<1x128xf32, #tpu.memory_space<vmem>>, vector<1x128xf32>
      tpu.vector_store %arg9[%c0_46, %c0_47], %75 {strides = array<i32>} : memref<1x128xf32, #tpu.memory_space<vmem>>, vector<1x128xf32>,
      %cst_48 = arith.constant 0.000000e+00 : f32
      %77 = vector.broadcast %cst_48 : f32 to vector<1x128xf32>
      %c0_49 = arith.constant 0 : index
      %c0_50 = arith.constant 0 : index
      %78 = vector.load %arg10[%c0_49, %c0_50] : memref<1x128xf32, #tpu.memory_space<vmem>>, vector<1x128xf32>
      tpu.vector_store %arg10[%c0_49, %c0_50], %77 {strides = array<i32>} : memref<1x128xf32, #tpu.memory_space<vmem>>, vector<1x128xf32>,
      %cst_51 = arith.constant 0.000000e+00 : f32
      %79 = vector.broadcast %cst_51 : f32 to vector<1x128xf32>
      %c0_52 = arith.constant 0 : index
      %c0_53 = arith.constant 0 : index
      %80 = vector.load %arg11[%c0_52, %c0_53] : memref<1x128xf32, #tpu.memory_space<vmem>>, vector<1x128xf32>
      tpu.vector_store %arg11[%c0_52, %c0_53], %79 {strides = array<i32>} : memref<1x128xf32, #tpu.memory_space<vmem>>, vector<1x128xf32>,
      %cst_54 = arith.constant 0.000000e+00 : f32
      %81 = vector.broadcast %cst_54 : f32 to vector<1x128xf32>
      %c0_55 = arith.constant 0 : index
      %c0_56 = arith.constant 0 : index
      %82 = vector.load %arg12[%c0_55, %c0_56] : memref<1x128xf32, #tpu.memory_space<vmem>>, vector<1x128xf32>
      tpu.vector_store %arg12[%c0_55, %c0_56], %81 {strides = array<i32>} : memref<1x128xf32, #tpu.memory_space<vmem>>, vector<1x128xf32>,
    } else {
    }
    %c0 = arith.constant 0 : index
    %c0_1 = arith.constant 0 : index
    %3 = vector.load %arg2[%c0, %c0_1] : memref<128x128xf32, #tpu.memory_space<vmem>>, vector<128x128xf32>
    %c0_2 = arith.constant 0 : index
    %c0_3 = arith.constant 0 : index
    %4 = vector.load %arg3[%c0_2, %c0_3] : memref<128x128xf32, #tpu.memory_space<vmem>>, vector<128x128xf32>
    %cst = arith.constant dense<0.000000e+00> : vector<128x128xf32>
    %5 = tpu.matmul %3, %4, %cst {dimension_numbers = #tpu.dot_dimension_numbers<[1], [0], [0], [1], [0, 0, 1, 1], [], []>} : vector<128x128xf32>, vector<128x128xf32>, vector<128x128xf32> -> vector<128x128xf32>
    %c0_4 = arith.constant 0 : index
    %c0_5 = arith.constant 0 : index
    %6 = vector.load %arg4[%c0_4, %c0_5] : memref<128x1xf32, #tpu.memory_space<vmem>>, vector<128x1xf32>
    %c0_6 = arith.constant 0 : index
    %c0_7 = arith.constant 0 : index
    %7 = vector.load %arg5[%c0_6, %c0_7] : memref<1x128xf32, #tpu.memory_space<vmem>>, vector<1x128xf32>
    %8 = vector.broadcast %6 : vector<128x1xf32> to vector<128x128xf32>
    %9 = vector.broadcast %7 : vector<1x128xf32> to vector<128x128xf32>
    %10 = arith.addf %8, %9 : vector<128x128xf32>
    %cst_8 = arith.constant 2.000000e+00 : f32
    %11 = vector.broadcast %cst_8 : f32 to vector<128x128xf32>
    %12 = arith.mulf %11, %5 : vector<128x128xf32>
    %13 = arith.subf %10, %12 : vector<128x128xf32>
    %cst_9 = arith.constant 0.000000e+00 : f32
    %14 = vector.broadcast %cst_9 : f32 to vector<128x128xf32>
    %15 = arith.maximumf %13, %14 : vector<128x128xf32>
    %16 = math.sqrt %15 : vector<128x128xf32>
    %c0_10 = arith.constant 0 : index
    %c0_11 = arith.constant 0 : index
    %17 = vector.load %arg6[%c0_10, %c0_11] : memref<128x1xi32, #tpu.memory_space<vmem>>, vector<128x1xi32>
    %c0_12 = arith.constant 0 : index
    %c0_13 = arith.constant 0 : index
    %18 = vector.load %arg7[%c0_12, %c0_13] : memref<1x128xi32, #tpu.memory_space<vmem>>, vector<1x128xi32>
    %19 = vector.broadcast %17 : vector<128x1xi32> to vector<128x128xi32>
    %20 = vector.broadcast %18 : vector<1x128xi32> to vector<128x128xi32>
    %21 = arith.cmpi eq, %19, %20 : vector<128x128xi32>
    %c128_i32 = arith.constant 128 : i32
    %22 = arith.muli %arg0, %c128_i32 : i32
    %23 = tpu.iota {dimensions = array<i32: 0>} : vector<128x128xi32>
    %24 = vector.broadcast %22 : i32 to vector<128x128xi32>
    %25 = arith.addi %24, %23 : vector<128x128xi32>
    %c128_i32_14 = arith.constant 128 : i32
    %26 = arith.muli %arg1, %c128_i32_14 : i32
    %27 = tpu.iota {dimensions = array<i32: 1>} : vector<128x128xi32>
    %28 = vector.broadcast %26 : i32 to vector<128x128xi32>
    %29 = arith.addi %28, %27 : vector<128x128xi32>
    %30 = arith.cmpi ne, %25, %29 : vector<128x128xi32>
    %31 = arith.andi %21, %30 : vector<128x128xi1>
    %cst_15 = arith.constant 0.000000e+00 : f32
    %32 = vector.broadcast %cst_15 : f32 to vector<128x128xf32>
    %33 = arith.subf %16, %32 : vector<128x128xf32>
    %cst_16 = arith.constant 0.000000e+00 : f32
    %34 = vector.broadcast %cst_16 : f32 to vector<128x128xf32>
    %35 = arith.maximumf %33, %34 : vector<128x128xf32>
    %cst_17 = arith.constant 0.000000e+00 : f32
    %36 = vector.broadcast %cst_17 : f32 to vector<128x128xf32>
    %37 = arith.select %31, %35, %36 : vector<128x128xi1>, vector<128x128xf32>
    %cst_18 = arith.constant 5.000000e-01 : f32
    %38 = vector.broadcast %cst_18 : f32 to vector<128x128xf32>
    %39 = arith.subf %38, %16 : vector<128x128xf32>
    %cst_19 = arith.constant 0.000000e+00 : f32
    %40 = vector.broadcast %cst_19 : f32 to vector<128x128xf32>
    %41 = arith.maximumf %39, %40 : vector<128x128xf32>
    %cst_20 = arith.constant 0.000000e+00 : f32
    %42 = vector.broadcast %cst_20 : f32 to vector<128x128xf32>
    %43 = arith.select %21, %42, %41 : vector<128x128xi1>, vector<128x128xf32>
    %c0_21 = arith.constant 0 : index
    %c0_22 = arith.constant 0 : index
    %44 = vector.load %arg9[%c0_21, %c0_22] : memref<1x128xf32, #tpu.memory_space<vmem>>, vector<1x128xf32>
    %cst_23 = arith.constant dense<0.000000e+00> : vector<128xf32>
    %45 = vector.multi_reduction <add>, %37, %cst_23 [0] : vector<128x128xf32> to vector<128xf32>
    %46 = vector.shape_cast %45 : vector<128xf32> to vector<1x128xf32>
    %47 = arith.addf %44, %46 : vector<1x128xf32>
    %c0_24 = arith.constant 0 : index
    %c0_25 = arith.constant 0 : index
    %48 = vector.load %arg9[%c0_24, %c0_25] : memref<1x128xf32, #tpu.memory_space<vmem>>, vector<1x128xf32>
    tpu.vector_store %arg9[%c0_24, %c0_25], %47 {strides = array<i32>} : memref<1x128xf32, #tpu.memory_space<vmem>>, vector<1x128xf32>,
    %c0_26 = arith.constant 0 : index
    %c0_27 = arith.constant 0 : index
    %49 = vector.load %arg10[%c0_26, %c0_27] : memref<1x128xf32, #tpu.memory_space<vmem>>, vector<1x128xf32>
    %cst_28 = arith.constant 0.000000e+00 : f32
    %50 = vector.broadcast %cst_28 : f32 to vector<128x128xf32>
    %51 = arith.cmpf ogt, %37, %50 : vector<128x128xf32>
    %52 = arith.extui %51 : vector<128x128xi1> to vector<128x128xi32>
    %53 = arith.sitofp %52 : vector<128x128xi32> to vector<128x128xf32>
    %cst_29 = arith.constant dense<0.000000e+00> : vector<128xf32>
    %54 = vector.multi_reduction <add>, %53, %cst_29 [0] : vector<128x128xf32> to vector<128xf32>
    %55 = vector.shape_cast %54 : vector<128xf32> to vector<1x128xf32>
    %56 = arith.addf %49, %55 : vector<1x128xf32>
    %c0_30 = arith.constant 0 : index
    %c0_31 = arith.constant 0 : index
    %57 = vector.load %arg10[%c0_30, %c0_31] : memref<1x128xf32, #tpu.memory_space<vmem>>, vector<1x128xf32>
    tpu.vector_store %arg10[%c0_30, %c0_31], %56 {strides = array<i32>} : memref<1x128xf32, #tpu.memory_space<vmem>>, vector<1x128xf32>,
    %c0_32 = arith.constant 0 : index
    %c0_33 = arith.constant 0 : index
    %58 = vector.load %arg11[%c0_32, %c0_33] : memref<1x128xf32, #tpu.memory_space<vmem>>, vector<1x128xf32>
    %cst_34 = arith.constant dense<0.000000e+00> : vector<128xf32>
    %59 = vector.multi_reduction <add>, %43, %cst_34 [0] : vector<128x128xf32> to vector<128xf32>
    %60 = vector.shape_cast %59 : vector<128xf32> to vector<1x128xf32>
    %61 = arith.addf %58, %60 : vector<1x128xf32>
    %c0_35 = arith.constant 0 : index
    %c0_36 = arith.constant 0 : index
    %62 = vector.load %arg11[%c0_35, %c0_36] : memref<1x128xf32, #tpu.memory_space<vmem>>, vector<1x128xf32>
    tpu.vector_store %arg11[%c0_35, %c0_36], %61 {strides = array<i32>} : memref<1x128xf32, #tpu.memory_space<vmem>>, vector<1x128xf32>,
    %c0_37 = arith.constant 0 : index
    %c0_38 = arith.constant 0 : index
    %63 = vector.load %arg12[%c0_37, %c0_38] : memref<1x128xf32, #tpu.memory_space<vmem>>, vector<1x128xf32>
    %cst_39 = arith.constant 0.000000e+00 : f32
    %64 = vector.broadcast %cst_39 : f32 to vector<128x128xf32>
    %65 = arith.cmpf ogt, %43, %64 : vector<128x128xf32>
    %66 = arith.extui %65 : vector<128x128xi1> to vector<128x128xi32>
    %67 = arith.sitofp %66 : vector<128x128xi32> to vector<128x128xf32>
    %cst_40 = arith.constant dense<0.000000e+00> : vector<128xf32>
    %68 = vector.multi_reduction <add>, %67, %cst_40 [0] : vector<128x128xf32> to vector<128xf32>
    %69 = vector.shape_cast %68 : vector<128xf32> to vector<1x128xf32>
    %70 = arith.addf %63, %69 : vector<1x128xf32>
    %c0_41 = arith.constant 0 : index
    %c0_42 = arith.constant 0 : index
    %71 = vector.load %arg12[%c0_41, %c0_42] : memref<1x128xf32, #tpu.memory_space<vmem>>, vector<1x128xf32>
    tpu.vector_store %arg12[%c0_41, %c0_42], %70 {strides = array<i32>} : memref<1x128xf32, #tpu.memory_space<vmem>>, vector<1x128xf32>,
    %c0_i32_43 = arith.constant 0 : i32
    %72 = arith.cmpi eq, %arg1, %c0_i32_43 : i32
    %73 = arith.extui %72 : i1 to i32
    %c0_i32_44 = arith.constant 0 : i32
    %74 = arith.cmpi ne, %73, %c0_i32_44 : i32
    scf.if %74 {
      %c0_45 = arith.constant 0 : index
      %c0_46 = arith.constant 0 : index
      %75 = vector.load %arg9[%c0_45, %c0_46] : memref<1x128xf32, #tpu.memory_space<vmem>>, vector<1x128xf32>
      %76 = vector.shape_cast %75 : vector<1x128xf32> to vector<1x1x128xf32>
      %cst_47 = arith.constant dense<0.000000e+00> : vector<1xf32>
      %77 = vector.multi_reduction <add>, %76, %cst_47 [1, 2] : vector<1x1x128xf32> to vector<1xf32>
      %78 = vector.shape_cast %77 : vector<1xf32> to vector<1x1x1xf32>
      %79 = vector.extract %78[0, 0, 0] : f32 from vector<1x1x1xf32>
      %c0_48 = arith.constant 0 : index
      %c0_49 = arith.constant 0 : index
      %80 = vector.load %arg10[%c0_48, %c0_49] : memref<1x128xf32, #tpu.memory_space<vmem>>, vector<1x128xf32>
      %81 = vector.shape_cast %80 : vector<1x128xf32> to vector<1x1x128xf32>
      %cst_50 = arith.constant dense<0.000000e+00> : vector<1xf32>
      %82 = vector.multi_reduction <add>, %81, %cst_50 [1, 2] : vector<1x1x128xf32> to vector<1xf32>
      %83 = vector.shape_cast %82 : vector<1xf32> to vector<1x1x1xf32>
      %84 = vector.extract %83[0, 0, 0] : f32 from vector<1x1x1xf32>
      %c0_51 = arith.constant 0 : index
      %c0_52 = arith.constant 0 : index
      %85 = vector.load %arg11[%c0_51, %c0_52] : memref<1x128xf32, #tpu.memory_space<vmem>>, vector<1x128xf32>
      %86 = vector.shape_cast %85 : vector<1x128xf32> to vector<1x1x128xf32>
      %cst_53 = arith.constant dense<0.000000e+00> : vector<1xf32>
      %87 = vector.multi_reduction <add>, %86, %cst_53 [1, 2] : vector<1x1x128xf32> to vector<1xf32>
      %88 = vector.shape_cast %87 : vector<1xf32> to vector<1x1x1xf32>
      %89 = vector.extract %88[0, 0, 0] : f32 from vector<1x1x1xf32>
      %c0_54 = arith.constant 0 : index
      %c0_55 = arith.constant 0 : index
      %90 = vector.load %arg12[%c0_54, %c0_55] : memref<1x128xf32, #tpu.memory_space<vmem>>, vector<1x128xf32>
      %91 = vector.shape_cast %90 : vector<1x128xf32> to vector<1x1x128xf32>
      %cst_56 = arith.constant dense<0.000000e+00> : vector<1xf32>
      %92 = vector.multi_reduction <add>, %91, %cst_56 [1, 2] : vector<1x1x128xf32> to vector<1xf32>
      %93 = vector.shape_cast %92 : vector<1xf32> to vector<1x1x1xf32>
      %94 = vector.extract %93[0, 0, 0] : f32 from vector<1x1x1xf32>
      %95 = tpu.iota {dimensions = array<i32: 1>} : vector<1x4x128xi32>
      %c0_i32_57 = arith.constant 0 : i32
      %96 = vector.broadcast %c0_i32_57 : i32 to vector<1x4x128xi32>
      %97 = arith.cmpi eq, %95, %96 : vector<1x4x128xi32>
      %cst_58 = arith.constant 0.000000e+00 : f32
      %98 = vector.broadcast %79 : f32 to vector<1x4x128xf32>
      %99 = vector.broadcast %cst_58 : f32 to vector<1x4x128xf32>
      %100 = arith.select %97, %98, %99 : vector<1x4x128xi1>, vector<1x4x128xf32>
      %c1_i32 = arith.constant 1 : i32
      %101 = vector.broadcast %c1_i32 : i32 to vector<1x4x128xi32>
      %102 = arith.cmpi eq, %95, %101 : vector<1x4x128xi32>
      %cst_59 = arith.constant 0.000000e+00 : f32
      %103 = vector.broadcast %84 : f32 to vector<1x4x128xf32>
      %104 = vector.broadcast %cst_59 : f32 to vector<1x4x128xf32>
      %105 = arith.select %102, %103, %104 : vector<1x4x128xi1>, vector<1x4x128xf32>
      %106 = arith.addf %100, %105 : vector<1x4x128xf32>
      %c2_i32 = arith.constant 2 : i32
      %107 = vector.broadcast %c2_i32 : i32 to vector<1x4x128xi32>
      %108 = arith.cmpi eq, %95, %107 : vector<1x4x128xi32>
      %cst_60 = arith.constant 0.000000e+00 : f32
      %109 = vector.broadcast %89 : f32 to vector<1x4x128xf32>
      %110 = vector.broadcast %cst_60 : f32 to vector<1x4x128xf32>
      %111 = arith.select %108, %109, %110 : vector<1x4x128xi1>, vector<1x4x128xf32>
      %112 = arith.addf %106, %111 : vector<1x4x128xf32>
      %c3_i32 = arith.constant 3 : i32
      %113 = vector.broadcast %c3_i32 : i32 to vector<1x4x128xi32>
      %114 = arith.cmpi eq, %95, %113 : vector<1x4x128xi32>
      %cst_61 = arith.constant 0.000000e+00 : f32
      %115 = vector.broadcast %94 : f32 to vector<1x4x128xf32>
      %116 = vector.broadcast %cst_61 : f32 to vector<1x4x128xf32>
      %117 = arith.select %114, %115, %116 : vector<1x4x128xi1>, vector<1x4x128xf32>
      %118 = arith.addf %112, %117 : vector<1x4x128xf32>
      %c0_62 = arith.constant 0 : index
      %c0_63 = arith.constant 0 : index
      %c0_64 = arith.constant 0 : index
      %119 = vector.load %arg8[%c0_62, %c0_63, %c0_64] : memref<1x4x128xf32, #tpu.memory_space<vmem>>, vector<1x4x128xf32>
      tpu.vector_store %arg8[%c0_62, %c0_63, %c0_64], %118 {strides = array<i32>} : memref<1x4x128xf32, #tpu.memory_space<vmem>>, vector<1x4x128xf32>,
    } else {
    }
    return
  }
  func.func @transform_0(%arg0: i32, %arg1: i32) -> (i32, i32) {
    %c0_i32 = arith.constant 0 : i32
    %c0_i32_0 = arith.constant 0 : i32
    return %arg0, %c0_i32 : i32, i32
  }
  func.func @transform_1(%arg0: i32, %arg1: i32) -> (i32, i32) {
    %c0_i32 = arith.constant 0 : i32
    %c0_i32_0 = arith.constant 0 : i32
    return %c0_i32, %arg1 : i32, i32
  }
  func.func @transform_2(%arg0: i32, %arg1: i32) -> (i32, i32) {
    %c0_i32 = arith.constant 0 : i32
    %c0_i32_0 = arith.constant 0 : i32
    return %arg0, %c0_i32 : i32, i32
  }
  func.func @transform_3(%arg0: i32, %arg1: i32) -> (i32, i32) {
    %c0_i32 = arith.constant 0 : i32
    %c0_i32_0 = arith.constant 0 : i32
    return %c0_i32, %arg1 : i32, i32
  }
  func.func @transform_4(%arg0: i32, %arg1: i32) -> (i32, i32) {
    %c0_i32 = arith.constant 0 : i32
    %c0_i32_0 = arith.constant 0 : i32
    return %arg0, %c0_i32 : i32, i32
  }
  func.func @transform_5(%arg0: i32, %arg1: i32) -> (i32, i32) {
    %c0_i32 = arith.constant 0 : i32
    %c0_i32_0 = arith.constant 0 : i32
    return %c0_i32, %arg1 : i32, i32
  }
  func.func @transform_6(%arg0: i32, %arg1: i32) -> (i32, i32, i32) {
    %c0_i32 = arith.constant 0 : i32
    %c0_i32_0 = arith.constant 0 : i32
    %c0_i32_1 = arith.constant 0 : i32
    return %arg0, %c0_i32, %c0_i32_0 : i32, i32, i32
  }
}

</mosaic_0001>

<llo_original>
// kernel: tpu_custom_call.1
$region0: #{tpu_custom_call.1}
  #allocation0 [shape = 'u32[]', space=smem, size = 0x4, offset = 0x4, fixed_abs, tag = 'smem constant byte address 0x4 - core index']
  #allocation1 [shape = 'u32[72,128]{1,0:T(1,128)}', space=vmem, size = 0x9000, scoped, tag = 'internal scratch']
  #allocation2 [shape = 'f32[1,128]{1,0:T(1,128)}', space=vmem, size = 0x200, scoped, tag = 'scratch operand']
  #allocation3 [shape = 'f32[1,128]{1,0:T(1,128)}', space=vmem, size = 0x200, scoped, tag = 'scratch operand']
  #allocation4 [shape = 'f32[1,128]{1,0:T(1,128)}', space=vmem, size = 0x200, scoped, tag = 'scratch operand']
  #allocation5 [shape = 'f32[1,128]{1,0:T(1,128)}', space=vmem, size = 0x200, scoped, tag = 'scratch operand']
  %s0 = inlined_call_operand.vmem [shape: f32[128,128], index: 0, kind: input, shape index: {}]
  %s1 = inlined_call_operand.vmem [shape: f32[128,128], index: 1, kind: input, shape index: {}]
  %s2 = inlined_call_operand.vmem [shape: f32[128,1], index: 2, kind: input, shape index: {}]
  %s3 = inlined_call_operand.vmem [shape: f32[1,128], index: 3, kind: input, shape index: {}]
  %s4 = inlined_call_operand.vmem [shape: s32[128,1], index: 4, kind: input, shape index: {}]
  %s5 = inlined_call_operand.vmem [shape: s32[1,128], index: 5, kind: input, shape index: {}]
  %s6 = inlined_call_operand.hbm [shape: f32[1,4,128], index: 6, kind: output, shape index: {}]
  %s7 = sld [smem:[#allocation0]]
  $region42: #{tpu_custom_call.1} parent=0
    _
  %s9 = ssub.s32 1, %s7
  %s10 = scalar_select 0, %s9, %s7
  $region1: #{tpu_custom_call.1} parent=0
    #allocation6 [shape = 'u8[2048]{0}', space=vmem, size = 0x800, scoped, tag = 'output window, operand 0, single buffered']
    #allocation7 [shape = 's32[1]{0}', space=sflag, size = 0x4, scoped, tag = 'scoped memory for tpu_custom_call.1']
    %11 = vsyncpa [#allocation7], 0
    // Predicated region
    $region2: #{tpu_custom_call.1} parent=1 // pred_check
      _
    $region3: #{tpu_custom_call.1} parent=1 // pred_check_branch
      %13 = sbr.rel (0) target = $region5
    $region4: #{tpu_custom_call.1} parent=1 // pred_region
      _
    $region5: #{tpu_custom_call.1} parent=1 // pred_fallthru
      _
    // Predicated region
    $region6: #{tpu_custom_call.1} parent=1 // pred_check
      _
    $region7: #{tpu_custom_call.1} parent=1 // pred_check_branch
      %15 = sbr.rel (0) target = $region9
    $region8: #{tpu_custom_call.1} parent=1 // pred_region
      _
    $region9: #{tpu_custom_call.1} parent=1 // pred_fallthru
      _
    // Predicated region
    $region10: #{tpu_custom_call.1} parent=1 // pred_check
      _
    $region11: #{tpu_custom_call.1} parent=1 // pred_check_branch
      %17 = sbr.rel (0) target = $region13
    $region12: #{tpu_custom_call.1} parent=1 // pred_region
      _
    $region13: #{tpu_custom_call.1} parent=1 // pred_fallthru
      _
    // Predicated region
    $region14: #{tpu_custom_call.1} parent=1 // pred_check
      _
    $region15: #{tpu_custom_call.1} parent=1 // pred_check_branch
      %19 = sbr.rel (0) target = $region17
    $region16: #{tpu_custom_call.1} parent=1 // pred_region
      _
    $region17: #{tpu_custom_call.1} parent=1 // pred_fallthru
      _
    // Predicated region
    $region18: #{tpu_custom_call.1} parent=1 // pred_check
      _
    $region19: #{tpu_custom_call.1} parent=1 // pred_check_branch
      %21 = sbr.rel (0) target = $region21
    $region20: #{tpu_custom_call.1} parent=1 // pred_region
      _
    $region21: #{tpu_custom_call.1} parent=1 // pred_fallthru
      _
    // Predicated region
    $region22: #{tpu_custom_call.1} parent=1 // pred_check
      _
    $region23: #{tpu_custom_call.1} parent=1 // pred_check_branch
      %23 = sbr.rel (0) target = $region25
    $region24: #{tpu_custom_call.1} parent=1 // pred_region
      _
    $region25: #{tpu_custom_call.1} parent=1 // pred_fallthru
      _
    %p24 = scmp.eq.s32.totalorder 0, 0
    // Predicated region
    $region26: #{tpu_custom_call.1} parent=1 // pred_check
      %p25 = pneg %p24
    $region27: #{tpu_custom_call.1} parent=1 // pred_check_branch
      %27 = sbr.rel (%p25) target = $region29
    $region28: #{tpu_custom_call.1} parent=1 // pred_region
      %28 = vst [vmem:[#allocation2] sm:$0x1] 0.0
      %29 = vst [vmem:[#allocation3] sm:$0x1] 0.0
      %30 = vst [vmem:[#allocation4] sm:$0x1] 0.0
      %31 = vst [vmem:[#allocation5] sm:$0x1] 0.0
    $region29: #{tpu_custom_call.1} parent=1 // pred_fallthru
      _
    %v32 = vld [vmem:[%s0] sm:$0xff]
    %v33 = vld [vmem:[%s0 + $0x8] sm:$0xff]
    %v34 = vld [vmem:[%s0 + $0x10] sm:$0xff]
    %v35 = vld [vmem:[%s0 + $0x18] sm:$0xff]
    %v36 = vld [vmem:[%s0 + $0x20] sm:$0xff]
    %v37 = vld [vmem:[%s0 + $0x28] sm:$0xff]
    %v38 = vld [vmem:[%s0 + $0x30] sm:$0xff]
    %v39 = vld [vmem:[%s0 + $0x38] sm:$0xff]
    %v40 = vld [vmem:[%s0 + $0x40] sm:$0xff]
    %v41 = vld [vmem:[%s0 + $0x48] sm:$0xff]
    %v42 = vld [vmem:[%s0 + $0x50] sm:$0xff]
    %v43 = vld [vmem:[%s0 + $0x58] sm:$0xff]
    %v44 = vld [vmem:[%s0 + $0x60] sm:$0xff]
    %v45 = vld [vmem:[%s0 + $0x68] sm:$0xff]
    %v46 = vld [vmem:[%s0 + $0x70] sm:$0xff]
    %v47 = vld [vmem:[%s0 + $0x78] sm:$0xff]
    %v48 = vld [vmem:[%s1] sm:$0xff]
    %v49 = vld [vmem:[%s1 + $0x8] sm:$0xff]
    %v50 = vld [vmem:[%s1 + $0x10] sm:$0xff]
    %v51 = vld [vmem:[%s1 + $0x18] sm:$0xff]
    %v52 = vld [vmem:[%s1 + $0x20] sm:$0xff]
    %v53 = vld [vmem:[%s1 + $0x28] sm:$0xff]
    %v54 = vld [vmem:[%s1 + $0x30] sm:$0xff]
    %v55 = vld [vmem:[%s1 + $0x38] sm:$0xff]
    %v56 = vld [vmem:[%s1 + $0x40] sm:$0xff]
    %v57 = vld [vmem:[%s1 + $0x48] sm:$0xff]
    %v58 = vld [vmem:[%s1 + $0x50] sm:$0xff]
    %v59 = vld [vmem:[%s1 + $0x58] sm:$0xff]
    %v60 = vld [vmem:[%s1 + $0x60] sm:$0xff]
    %v61 = vld [vmem:[%s1 + $0x68] sm:$0xff]
    %v62 = vld [vmem:[%s1 + $0x70] sm:$0xff]
    %v63 = vld [vmem:[%s1 + $0x78] sm:$0xff]
    %64 = vmatpush.msra.mxu0 %v63
    %65 = vmatpush.msra.mxu0 %v62
    %66 = vmatpush.msra.mxu0 %v61
    %67 = vmatpush.msra.mxu0 %v60
    %68 = vmatpush.msra.mxu0 %v59
    %69 = vmatpush.msra.mxu0 %v58
    %70 = vmatpush.msra.mxu0 %v57
    %71 = vmatpush.msra.mxu0 %v56
    %72 = vmatpush.msra.mxu0 %v55
    %73 = vmatpush.msra.mxu0 %v54
    %74 = vmatpush.msra.mxu0 %v53
    %75 = vmatpush.msra.mxu0 %v52
    %76 = vmatpush.msra.mxu0 %v51
    %77 = vmatpush.msra.mxu0 %v50
    %78 = vmatpush.msra.mxu0 %v49
    %79 = vmatpush.msra.mxu0 %v48
    %80 = vmatmul.f32.gmra.mxu0 %v32
    %v81 = vpop.f32.mrf.mxu0
    %v82 = vadd.f32 0.0, %v81
    %83 = vmatmul.f32.gmra.mxu0 %v33
    %v84 = vpop.f32.mrf.mxu0
    %v85 = vadd.f32 0.0, %v84
    %86 = vmatmul.f32.gmra.mxu0 %v34
    %v87 = vpop.f32.mrf.mxu0
    %v88 = vadd.f32 0.0, %v87
    %89 = vmatmul.f32.gmra.mxu0 %v35
    %v90 = vpop.f32.mrf.mxu0
    %v91 = vadd.f32 0.0, %v90
    %92 = vmatmul.f32.gmra.mxu0 %v36
    %v93 = vpop.f32.mrf.mxu0
    %v94 = vadd.f32 0.0, %v93
    %95 = vmatmul.f32.gmra.mxu0 %v37
    %v96 = vpop.f32.mrf.mxu0
    %v97 = vadd.f32 0.0, %v96
    %98 = vmatmul.f32.gmra.mxu0 %v38
    %v99 = vpop.f32.mrf.mxu0
    %v100 = vadd.f32 0.0, %v99
    %101 = vmatmul.f32.gmra.mxu0 %v39
    %v102 = vpop.f32.mrf.mxu0
    %v103 = vadd.f32 0.0, %v102
    %104 = vmatmul.f32.gmra.mxu0 %v40
    %v105 = vpop.f32.mrf.mxu0
    %v106 = vadd.f32 0.0, %v105
    %107 = vmatmul.f32.gmra.mxu0 %v41
    %v108 = vpop.f32.mrf.mxu0
    %v109 = vadd.f32 0.0, %v108
    %110 = vmatmul.f32.gmra.mxu0 %v42
    %v111 = vpop.f32.mrf.mxu0
    %v112 = vadd.f32 0.0, %v111
    %113 = vmatmul.f32.gmra.mxu0 %v43
    %v114 = vpop.f32.mrf.mxu0
    %v115 = vadd.f32 0.0, %v114
    %116 = vmatmul.f32.gmra.mxu0 %v44
    %v117 = vpop.f32.mrf.mxu0
    %v118 = vadd.f32 0.0, %v117
    %119 = vmatmul.f32.gmra.mxu0 %v45
    %v120 = vpop.f32.mrf.mxu0
    %v121 = vadd.f32 0.0, %v120
    %122 = vmatmul.f32.gmra.mxu0 %v46
    %v123 = vpop.f32.mrf.mxu0
    %v124 = vadd.f32 0.0, %v123
    %125 = vmatmul.f32.gmra.mxu0 %v47
    %v126 = vpop.f32.mrf.mxu0
    %v127 = vadd.f32 0.0, %v126
    %128 = vdwg.mxu0
    %v129 = vld [vmem:[%s2] sm:$0xff]
    %v130 = vld [vmem:[%s2 + $0x8] sm:$0xff]
    %v131 = vld [vmem:[%s2 + $0x10] sm:$0xff]
    %v132 = vld [vmem:[%s2 + $0x18] sm:$0xff]
    %v133 = vld [vmem:[%s2 + $0x20] sm:$0xff]
    %v134 = vld [vmem:[%s2 + $0x28] sm:$0xff]
    %v135 = vld [vmem:[%s2 + $0x30] sm:$0xff]
    %v136 = vld [vmem:[%s2 + $0x38] sm:$0xff]
    %v137 = vld [vmem:[%s2 + $0x40] sm:$0xff]
    %v138 = vld [vmem:[%s2 + $0x48] sm:$0xff]
    %v139 = vld [vmem:[%s2 + $0x50] sm:$0xff]
    %v140 = vld [vmem:[%s2 + $0x58] sm:$0xff]
    %v141 = vld [vmem:[%s2 + $0x60] sm:$0xff]
    %v142 = vld [vmem:[%s2 + $0x68] sm:$0xff]
    %v143 = vld [vmem:[%s2 + $0x70] sm:$0xff]
    %v144 = vld [vmem:[%s2 + $0x78] sm:$0xff]
    %v145 = vld [vmem:[%s3] sm:$0x1]
    %147 = vset.pattern.permute.xlu0 0
    %148 = vperm.xlu0 %147, %v129
    %v149 = vpop.permute.xlu0 %148
    %152 = vset.pattern.permute.xlu0 0
    %153 = vperm.xlu0 %152, %v130
    %v154 = vpop.permute.xlu0 %153
    %157 = vset.pattern.permute.xlu0 0
    %158 = vperm.xlu0 %157, %v131
    %v159 = vpop.permute.xlu0 %158
    %162 = vset.pattern.permute.xlu0 0
    %163 = vperm.xlu0 %162, %v132
    %v164 = vpop.permute.xlu0 %163
    %167 = vset.pattern.permute.xlu0 0
    %168 = vperm.xlu0 %167, %v133
    %v169 = vpop.permute.xlu0 %168
    %172 = vset.pattern.permute.xlu0 0
    %173 = vperm.xlu0 %172, %v134
    %v174 = vpop.permute.xlu0 %173
    %177 = vset.pattern.permute.xlu0 0
    %178 = vperm.xlu0 %177, %v135
    %v179 = vpop.permute.xlu0 %178
    %182 = vset.pattern.permute.xlu0 0
    %183 = vperm.xlu0 %182, %v136
    %v184 = vpop.permute.xlu0 %183
    %187 = vset.pattern.permute.xlu0 0
    %188 = vperm.xlu0 %187, %v137
    %v189 = vpop.permute.xlu0 %188
    %192 = vset.pattern.permute.xlu0 0
    %193 = vperm.xlu0 %192, %v138
    %v194 = vpop.permute.xlu0 %193
    %197 = vset.pattern.permute.xlu0 0
    %198 = vperm.xlu0 %197, %v139
    %v199 = vpop.permute.xlu0 %198
    %202 = vset.pattern.permute.xlu0 0
    %203 = vperm.xlu0 %202, %v140
    %v204 = vpop.permute.xlu0 %203
    %207 = vset.pattern.permute.xlu0 0
    %208 = vperm.xlu0 %207, %v141
    %v209 = vpop.permute.xlu0 %208
    %212 = vset.pattern.permute.xlu0 0
    %213 = vperm.xlu0 %212, %v142
    %v214 = vpop.permute.xlu0 %213
    %217 = vset.pattern.permute.xlu0 0
    %218 = vperm.xlu0 %217, %v143
    %v219 = vpop.permute.xlu0 %218
    %222 = vset.pattern.permute.xlu0 0
    %223 = vperm.xlu0 %222, %v144
    %v224 = vpop.permute.xlu0 %223
    %v227 = vperm.slane %v145, 0
    %v229 = vadd.f32 %v149, %v227
    %v230 = vadd.f32 %v154, %v227
    %v231 = vadd.f32 %v159, %v227
    %v232 = vadd.f32 %v164, %v227
    %v233 = vadd.f32 %v169, %v227
    %v234 = vadd.f32 %v174, %v227
    %v235 = vadd.f32 %v179, %v227
    %v236 = vadd.f32 %v184, %v227
    %v237 = vadd.f32 %v189, %v227
    %v238 = vadd.f32 %v194, %v227
    %v239 = vadd.f32 %v199, %v227
    %v240 = vadd.f32 %v204, %v227
    %v241 = vadd.f32 %v209, %v227
    %v242 = vadd.f32 %v214, %v227
    %v243 = vadd.f32 %v219, %v227
    %v244 = vadd.f32 %v224, %v227
    %v245 = vmul.f32 %v82, 2.0
    %v246 = vmul.f32 %v85, 2.0
    %v247 = vmul.f32 %v88, 2.0
    %v248 = vmul.f32 %v91, 2.0
    %v249 = vmul.f32 %v94, 2.0
    %v250 = vmul.f32 %v97, 2.0
    %v251 = vmul.f32 %v100, 2.0
    %v252 = vmul.f32 %v103, 2.0
    %v253 = vmul.f32 %v106, 2.0
    %v254 = vmul.f32 %v109, 2.0
    %v255 = vmul.f32 %v112, 2.0
    %v256 = vmul.f32 %v115, 2.0
    %v257 = vmul.f32 %v118, 2.0
    %v258 = vmul.f32 %v121, 2.0
    %v259 = vmul.f32 %v124, 2.0
    %v260 = vmul.f32 %v127, 2.0
    %v261 = vsub.f32 %v229, %v245
    %v262 = vsub.f32 %v230, %v246
    %v263 = vsub.f32 %v231, %v247
    %v264 = vsub.f32 %v232, %v248
    %v265 = vsub.f32 %v233, %v249
    %v266 = vsub.f32 %v234, %v250
    %v267 = vsub.f32 %v235, %v251
    %v268 = vsub.f32 %v236, %v252
    %v269 = vsub.f32 %v237, %v253
    %v270 = vsub.f32 %v238, %v254
    %v271 = vsub.f32 %v239, %v255
    %v272 = vsub.f32 %v240, %v256
    %v273 = vsub.f32 %v241, %v257
    %v274 = vsub.f32 %v242, %v258
    %v275 = vsub.f32 %v243, %v259
    %v276 = vsub.f32 %v244, %v260
    %v277 = vmax.f32 %v261, 0.0
    %v278 = vmax.f32 %v262, 0.0
    %v279 = vmax.f32 %v263, 0.0
    %v280 = vmax.f32 %v264, 0.0
    %v281 = vmax.f32 %v265, 0.0
    %v282 = vmax.f32 %v266, 0.0
    %v283 = vmax.f32 %v267, 0.0
    %v284 = vmax.f32 %v268, 0.0
    %v285 = vmax.f32 %v269, 0.0
    %v286 = vmax.f32 %v270, 0.0
    %v287 = vmax.f32 %v271, 0.0
    %v288 = vmax.f32 %v272, 0.0
    %v289 = vmax.f32 %v273, 0.0
    %v290 = vmax.f32 %v274, 0.0
    %v291 = vmax.f32 %v275, 0.0
    %v292 = vmax.f32 %v276, 0.0
    %v293 = vrsqrt.pop %v277
    %v294 = vmul.f32 %v293, %v277
    %v295 = vmul.f32 %v294, %v293
    %v296 = vmul.f32 0.5, %v295
    %v297 = vsub.f32 1.5, %v296
    %v298 = vmul.f32 %v293, %v297
    %v299 = vmul.f32 %v277, %v298
    %vm300 = vcmp.eq.f32.partialorder %v277, inf
    %v301 = vsel %vm300, %v277, %v299
    %vm302 = vcmp.eq.f32.partialorder %v277, 0.0
    %v303 = vand.u32 %v277, 2147483648
    %v304 = vsel %vm302, %v303, %v301
    %v305 = vrsqrt.pop %v278
    %v306 = vmul.f32 %v305, %v278
    %v307 = vmul.f32 %v306, %v305
    %v308 = vmul.f32 0.5, %v307
    %v309 = vsub.f32 1.5, %v308
    %v310 = vmul.f32 %v305, %v309
    %v311 = vmul.f32 %v278, %v310
    %vm312 = vcmp.eq.f32.partialorder %v278, inf
    %v313 = vsel %vm312, %v278, %v311
    %vm314 = vcmp.eq.f32.partialorder %v278, 0.0
    %v315 = vand.u32 %v278, 2147483648
    %v316 = vsel %vm314, %v315, %v313
    %v317 = vrsqrt.pop %v279
    %v318 = vmul.f32 %v317, %v279
    %v319 = vmul.f32 %v318, %v317
    %v320 = vmul.f32 0.5, %v319
    %v321 = vsub.f32 1.5, %v320
    %v322 = vmul.f32 %v317, %v321
    %v323 = vmul.f32 %v279, %v322
    %vm324 = vcmp.eq.f32.partialorder %v279, inf
    %v325 = vsel %vm324, %v279, %v323
    %vm326 = vcmp.eq.f32.partialorder %v279, 0.0
    %v327 = vand.u32 %v279, 2147483648
    %v328 = vsel %vm326, %v327, %v325
    %v329 = vrsqrt.pop %v280
    %v330 = vmul.f32 %v329, %v280
    %v331 = vmul.f32 %v330, %v329
    %v332 = vmul.f32 0.5, %v331
    %v333 = vsub.f32 1.5, %v332
    %v334 = vmul.f32 %v329, %v333
    %v335 = vmul.f32 %v280, %v334
    %vm336 = vcmp.eq.f32.partialorder %v280, inf
    %v337 = vsel %vm336, %v280, %v335
    %vm338 = vcmp.eq.f32.partialorder %v280, 0.0
    %v339 = vand.u32 %v280, 2147483648
    %v340 = vsel %vm338, %v339, %v337
    %v341 = vrsqrt.pop %v281
    %v342 = vmul.f32 %v341, %v281
    %v343 = vmul.f32 %v342, %v341
    %v344 = vmul.f32 0.5, %v343
    %v345 = vsub.f32 1.5, %v344
    %v346 = vmul.f32 %v341, %v345
    %v347 = vmul.f32 %v281, %v346
    %vm348 = vcmp.eq.f32.partialorder %v281, inf
    %v349 = vsel %vm348, %v281, %v347
    %vm350 = vcmp.eq.f32.partialorder %v281, 0.0
    %v351 = vand.u32 %v281, 2147483648
    %v352 = vsel %vm350, %v351, %v349
    %v353 = vrsqrt.pop %v282
    %v354 = vmul.f32 %v353, %v282
    %v355 = vmul.f32 %v354, %v353
    %v356 = vmul.f32 0.5, %v355
    %v357 = vsub.f32 1.5, %v356
    %v358 = vmul.f32 %v353, %v357
    %v359 = vmul.f32 %v282, %v358
    %vm360 = vcmp.eq.f32.partialorder %v282, inf
    %v361 = vsel %vm360, %v282, %v359
    %vm362 = vcmp.eq.f32.partialorder %v282, 0.0
    %v363 = vand.u32 %v282, 2147483648
    %v364 = vsel %vm362, %v363, %v361
    %v365 = vrsqrt.pop %v283
    %v366 = vmul.f32 %v365, %v283
    %v367 = vmul.f32 %v366, %v365
    %v368 = vmul.f32 0.5, %v367
    %v369 = vsub.f32 1.5, %v368
    %v370 = vmul.f32 %v365, %v369
    %v371 = vmul.f32 %v283, %v370
    %vm372 = vcmp.eq.f32.partialorder %v283, inf
    %v373 = vsel %vm372, %v283, %v371
    %vm374 = vcmp.eq.f32.partialorder %v283, 0.0
    %v375 = vand.u32 %v283, 2147483648
    %v376 = vsel %vm374, %v375, %v373
    %v377 = vrsqrt.pop %v284
    %v378 = vmul.f32 %v377, %v284
    %v379 = vmul.f32 %v378, %v377
    %v380 = vmul.f32 0.5, %v379
    %v381 = vsub.f32 1.5, %v380
    %v382 = vmul.f32 %v377, %v381
    %v383 = vmul.f32 %v284, %v382
    %vm384 = vcmp.eq.f32.partialorder %v284, inf
    %v385 = vsel %vm384, %v284, %v383
    %vm386 = vcmp.eq.f32.partialorder %v284, 0.0
    %v387 = vand.u32 %v284, 2147483648
    %v388 = vsel %vm386, %v387, %v385
    %v389 = vrsqrt.pop %v285
    %v390 = vmul.f32 %v389, %v285
    %v391 = vmul.f32 %v390, %v389
    %v392 = vmul.f32 0.5, %v391
    %v393 = vsub.f32 1.5, %v392
    %v394 = vmul.f32 %v389, %v393
    %v395 = vmul.f32 %v285, %v394
    %vm396 = vcmp.eq.f32.partialorder %v285, inf
    %v397 = vsel %vm396, %v285, %v395
    %vm398 = vcmp.eq.f32.partialorder %v285, 0.0
    %v399 = vand.u32 %v285, 2147483648
    %v400 = vsel %vm398, %v399, %v397
    %v401 = vrsqrt.pop %v286
    %v402 = vmul.f32 %v401, %v286
    %v403 = vmul.f32 %v402, %v401
    %v404 = vmul.f32 0.5, %v403
    %v405 = vsub.f32 1.5, %v404
    %v406 = vmul.f32 %v401, %v405
    %v407 = vmul.f32 %v286, %v406
    %vm408 = vcmp.eq.f32.partialorder %v286, inf
    %v409 = vsel %vm408, %v286, %v407
    %vm410 = vcmp.eq.f32.partialorder %v286, 0.0
    %v411 = vand.u32 %v286, 2147483648
    %v412 = vsel %vm410, %v411, %v409
    %v413 = vrsqrt.pop %v287
    %v414 = vmul.f32 %v413, %v287
    %v415 = vmul.f32 %v414, %v413
    %v416 = vmul.f32 0.5, %v415
    %v417 = vsub.f32 1.5, %v416
    %v418 = vmul.f32 %v413, %v417
    %v419 = vmul.f32 %v287, %v418
    %vm420 = vcmp.eq.f32.partialorder %v287, inf
    %v421 = vsel %vm420, %v287, %v419
    %vm422 = vcmp.eq.f32.partialorder %v287, 0.0
    %v423 = vand.u32 %v287, 2147483648
    %v424 = vsel %vm422, %v423, %v421
    %v425 = vrsqrt.pop %v288
    %v426 = vmul.f32 %v425, %v288
    %v427 = vmul.f32 %v426, %v425
    %v428 = vmul.f32 0.5, %v427
    %v429 = vsub.f32 1.5, %v428
    %v430 = vmul.f32 %v425, %v429
    %v431 = vmul.f32 %v288, %v430
    %vm432 = vcmp.eq.f32.partialorder %v288, inf
    %v433 = vsel %vm432, %v288, %v431
    %vm434 = vcmp.eq.f32.partialorder %v288, 0.0
    %v435 = vand.u32 %v288, 2147483648
    %v436 = vsel %vm434, %v435, %v433
    %v437 = vrsqrt.pop %v289
    %v438 = vmul.f32 %v437, %v289
    %v439 = vmul.f32 %v438, %v437
    %v440 = vmul.f32 0.5, %v439
    %v441 = vsub.f32 1.5, %v440
    %v442 = vmul.f32 %v437, %v441
    %v443 = vmul.f32 %v289, %v442
    %vm444 = vcmp.eq.f32.partialorder %v289, inf
    %v445 = vsel %vm444, %v289, %v443
    %vm446 = vcmp.eq.f32.partialorder %v289, 0.0
    %v447 = vand.u32 %v289, 2147483648
    %v448 = vsel %vm446, %v447, %v445
    %v449 = vrsqrt.pop %v290
    %v450 = vmul.f32 %v449, %v290
    %v451 = vmul.f32 %v450, %v449
    %v452 = vmul.f32 0.5, %v451
    %v453 = vsub.f32 1.5, %v452
    %v454 = vmul.f32 %v449, %v453
    %v455 = vmul.f32 %v290, %v454
    %vm456 = vcmp.eq.f32.partialorder %v290, inf
    %v457 = vsel %vm456, %v290, %v455
    %vm458 = vcmp.eq.f32.partialorder %v290, 0.0
    %v459 = vand.u32 %v290, 2147483648
    %v460 = vsel %vm458, %v459, %v457
    %v461 = vrsqrt.pop %v291
    %v462 = vmul.f32 %v461, %v291
    %v463 = vmul.f32 %v462, %v461
    %v464 = vmul.f32 0.5, %v463
    %v465 = vsub.f32 1.5, %v464
    %v466 = vmul.f32 %v461, %v465
    %v467 = vmul.f32 %v291, %v466
    %vm468 = vcmp.eq.f32.partialorder %v291, inf
    %v469 = vsel %vm468, %v291, %v467
    %vm470 = vcmp.eq.f32.partialorder %v291, 0.0
    %v471 = vand.u32 %v291, 2147483648
    %v472 = vsel %vm470, %v471, %v469
    %v473 = vrsqrt.pop %v292
    %v474 = vmul.f32 %v473, %v292
    %v475 = vmul.f32 %v474, %v473
    %v476 = vmul.f32 0.5, %v475
    %v477 = vsub.f32 1.5, %v476
    %v478 = vmul.f32 %v473, %v477
    %v479 = vmul.f32 %v292, %v478
    %vm480 = vcmp.eq.f32.partialorder %v292, inf
    %v481 = vsel %vm480, %v292, %v479
    %vm482 = vcmp.eq.f32.partialorder %v292, 0.0
    %v483 = vand.u32 %v292, 2147483648
    %v484 = vsel %vm482, %v483, %v481
    %v485 = vld [vmem:[%s4] sm:$0xff]
    %v486 = vld [vmem:[%s4 + $0x8] sm:$0xff]
    %v487 = vld [vmem:[%s4 + $0x10] sm:$0xff]
    %v488 = vld [vmem:[%s4 + $0x18] sm:$0xff]
    %v489 = vld [vmem:[%s4 + $0x20] sm:$0xff]
    %v490 = vld [vmem:[%s4 + $0x28] sm:$0xff]
    %v491 = vld [vmem:[%s4 + $0x30] sm:$0xff]
    %v492 = vld [vmem:[%s4 + $0x38] sm:$0xff]
    %v493 = vld [vmem:[%s4 + $0x40] sm:$0xff]
    %v494 = vld [vmem:[%s4 + $0x48] sm:$0xff]
    %v495 = vld [vmem:[%s4 + $0x50] sm:$0xff]
    %v496 = vld [vmem:[%s4 + $0x58] sm:$0xff]
    %v497 = vld [vmem:[%s4 + $0x60] sm:$0xff]
    %v498 = vld [vmem:[%s4 + $0x68] sm:$0xff]
    %v499 = vld [vmem:[%s4 + $0x70] sm:$0xff]
    %v500 = vld [vmem:[%s4 + $0x78] sm:$0xff]
    %v501 = vld [vmem:[%s5] sm:$0x1]
    %502 = vset.pattern.permute.xlu0 0
    %503 = vperm.xlu0 %502, %v485
    %v504 = vpop.permute.xlu0 %503
    %505 = vset.pattern.permute.xlu0 0
    %506 = vperm.xlu0 %505, %v486
    %v507 = vpop.permute.xlu0 %506
    %508 = vset.pattern.permute.xlu0 0
    %509 = vperm.xlu0 %508, %v487
    %v510 = vpop.permute.xlu0 %509
    %511 = vset.pattern.permute.xlu0 0
    %512 = vperm.xlu0 %511, %v488
    %v513 = vpop.permute.xlu0 %512
    %514 = vset.pattern.permute.xlu0 0
    %515 = vperm.xlu0 %514, %v489
    %v516 = vpop.permute.xlu0 %515
    %517 = vset.pattern.permute.xlu0 0
    %518 = vperm.xlu0 %517, %v490
    %v519 = vpop.permute.xlu0 %518
    %520 = vset.pattern.permute.xlu0 0
    %521 = vperm.xlu0 %520, %v491
    %v522 = vpop.permute.xlu0 %521
    %523 = vset.pattern.permute.xlu0 0
    %524 = vperm.xlu0 %523, %v492
    %v525 = vpop.permute.xlu0 %524
    %526 = vset.pattern.permute.xlu0 0
    %527 = vperm.xlu0 %526, %v493
    %v528 = vpop.permute.xlu0 %527
    %529 = vset.pattern.permute.xlu0 0
    %530 = vperm.xlu0 %529, %v494
    %v531 = vpop.permute.xlu0 %530
    %532 = vset.pattern.permute.xlu0 0
    %533 = vperm.xlu0 %532, %v495
    %v534 = vpop.permute.xlu0 %533
    %535 = vset.pattern.permute.xlu0 0
    %536 = vperm.xlu0 %535, %v496
    %v537 = vpop.permute.xlu0 %536
    %538 = vset.pattern.permute.xlu0 0
    %539 = vperm.xlu0 %538, %v497
    %v540 = vpop.permute.xlu0 %539
    %541 = vset.pattern.permute.xlu0 0
    %542 = vperm.xlu0 %541, %v498
    %v543 = vpop.permute.xlu0 %542
    %544 = vset.pattern.permute.xlu0 0
    %545 = vperm.xlu0 %544, %v499
    %v546 = vpop.permute.xlu0 %545
    %547 = vset.pattern.permute.xlu0 0
    %548 = vperm.xlu0 %547, %v500
    %v549 = vpop.permute.xlu0 %548
    %v550 = vperm.slane %v501, 0
    %vm551 = vcmp.eq.s32.totalorder %v504, %v550
    %vm552 = vcmp.eq.s32.totalorder %v507, %v550
    %vm553 = vcmp.eq.s32.totalorder %v510, %v550
    %vm554 = vcmp.eq.s32.totalorder %v513, %v550
    %vm555 = vcmp.eq.s32.totalorder %v516, %v550
    %vm556 = vcmp.eq.s32.totalorder %v519, %v550
    %vm557 = vcmp.eq.s32.totalorder %v522, %v550
    %vm558 = vcmp.eq.s32.totalorder %v525, %v550
    %vm559 = vcmp.eq.s32.totalorder %v528, %v550
    %vm560 = vcmp.eq.s32.totalorder %v531, %v550
    %vm561 = vcmp.eq.s32.totalorder %v534, %v550
    %vm562 = vcmp.eq.s32.totalorder %v537, %v550
    %vm563 = vcmp.eq.s32.totalorder %v540, %v550
    %vm564 = vcmp.eq.s32.totalorder %v543, %v550
    %vm565 = vcmp.eq.s32.totalorder %v546, %v550
    %vm566 = vcmp.eq.s32.totalorder %v549, %v550
    %s567 = smul.u32 0, 128
    %v568 = vlaneseq
    %v569 = vshrl.u32 %v568, 7
    %v570 = vadd.s32 %v569, 8
    %v571 = vadd.s32 %v569, 16
    %v572 = vadd.s32 %v569, 24
    %v573 = vadd.s32 %v569, 32
    %v574 = vadd.s32 %v569, 40
    %v575 = vadd.s32 %v569, 48
    %v576 = vadd.s32 %v569, 56
    %v577 = vadd.s32 %v569, 64
    %v578 = vadd.s32 %v569, 72
    %v579 = vadd.s32 %v569, 80
    %v580 = vadd.s32 %v569, 88
    %v581 = vadd.s32 %v569, 96
    %v582 = vadd.s32 %v569, 104
    %v583 = vadd.s32 %v569, 112
    %v584 = vadd.s32 %v569, 120
    %v585 = vstv %s567
    %v586 = vadd.s32 %v585, %v569
    %v587 = vadd.s32 %v585, %v570
    %v588 = vadd.s32 %v585, %v571
    %v589 = vadd.s32 %v585, %v572
    %v590 = vadd.s32 %v585, %v573
    %v591 = vadd.s32 %v585, %v574
    %v592 = vadd.s32 %v585, %v575
    %v593 = vadd.s32 %v585, %v576
    %v594 = vadd.s32 %v585, %v577
    %v595 = vadd.s32 %v585, %v578
    %v596 = vadd.s32 %v585, %v579
    %v597 = vadd.s32 %v585, %v580
    %v598 = vadd.s32 %v585, %v581
    %v599 = vadd.s32 %v585, %v582
    %v600 = vadd.s32 %v585, %v583
    %v601 = vadd.s32 %v585, %v584
    %s602 = smul.u32 0, 128
    %v603 = vlaneseq
    %v604 = vand.u32 %v603, 127
    %v605 = vstv %s602
    %v606 = vadd.s32 %v605, %v604
    %vm607 = vcmp.ne.s32.totalorder %v586, %v606
    %vm608 = vcmp.ne.s32.totalorder %v587, %v606
    %vm609 = vcmp.ne.s32.totalorder %v588, %v606
    %vm610 = vcmp.ne.s32.totalorder %v589, %v606
    %vm611 = vcmp.ne.s32.totalorder %v590, %v606
    %vm612 = vcmp.ne.s32.totalorder %v591, %v606
    %vm613 = vcmp.ne.s32.totalorder %v592, %v606
    %vm614 = vcmp.ne.s32.totalorder %v593, %v606
    %vm615 = vcmp.ne.s32.totalorder %v594, %v606
    %vm616 = vcmp.ne.s32.totalorder %v595, %v606
    %vm617 = vcmp.ne.s32.totalorder %v596, %v606
    %vm618 = vcmp.ne.s32.totalorder %v597, %v606
    %vm619 = vcmp.ne.s32.totalorder %v598, %v606
    %vm620 = vcmp.ne.s32.totalorder %v599, %v606
    %vm621 = vcmp.ne.s32.totalorder %v600, %v606
    %vm622 = vcmp.ne.s32.totalorder %v601, %v606
    %vm623 = vmand %vm551, %vm607
    %vm624 = vmand %vm552, %vm608
    %vm625 = vmand %vm553, %vm609
    %vm626 = vmand %vm554, %vm610
    %vm627 = vmand %vm555, %vm611
    %vm628 = vmand %vm556, %vm612
    %vm629 = vmand %vm557, %vm613
    %vm630 = vmand %vm558, %vm614
    %vm631 = vmand %vm559, %vm615
    %vm632 = vmand %vm560, %vm616
    %vm633 = vmand %vm561, %vm617
    %vm634 = vmand %vm562, %vm618
    %vm635 = vmand %vm563, %vm619
    %vm636 = vmand %vm564, %vm620
    %vm637 = vmand %vm565, %vm621
    %vm638 = vmand %vm566, %vm622
    %v639 = vmax.f32 %v304, 0.0
    %v640 = vmax.f32 %v316, 0.0
    %v641 = vmax.f32 %v328, 0.0
    %v642 = vmax.f32 %v340, 0.0
    %v643 = vmax.f32 %v352, 0.0
    %v644 = vmax.f32 %v364, 0.0
    %v645 = vmax.f32 %v376, 0.0
    %v646 = vmax.f32 %v388, 0.0
    %v647 = vmax.f32 %v400, 0.0
    %v648 = vmax.f32 %v412, 0.0
    %v649 = vmax.f32 %v424, 0.0
    %v650 = vmax.f32 %v436, 0.0
    %v651 = vmax.f32 %v448, 0.0
    %v652 = vmax.f32 %v460, 0.0
    %v653 = vmax.f32 %v472, 0.0
    %v654 = vmax.f32 %v484, 0.0
    %v655 = vsel %vm623, %v639, 0.0
    %v656 = vsel %vm624, %v640, 0.0
    %v657 = vsel %vm625, %v641, 0.0
    %v658 = vsel %vm626, %v642, 0.0
    %v659 = vsel %vm627, %v643, 0.0
    %v660 = vsel %vm628, %v644, 0.0
    %v661 = vsel %vm629, %v645, 0.0
    %v662 = vsel %vm630, %v646, 0.0
    %v663 = vsel %vm631, %v647, 0.0
    %v664 = vsel %vm632, %v648, 0.0
    %v665 = vsel %vm633, %v649, 0.0
    %v666 = vsel %vm634, %v650, 0.0
    %v667 = vsel %vm635, %v651, 0.0
    %v668 = vsel %vm636, %v652, 0.0
    %v669 = vsel %vm637, %v653, 0.0
    %v670 = vsel %vm638, %v654, 0.0
    %v671 = vsub.f32 0.5, %v304
    %v672 = vsub.f32 0.5, %v316
    %v673 = vsub.f32 0.5, %v328
    %v674 = vsub.f32 0.5, %v340
    %v675 = vsub.f32 0.5, %v352
    %v676 = vsub.f32 0.5, %v364
    %v677 = vsub.f32 0.5, %v376
    %v678 = vsub.f32 0.5, %v388
    %v679 = vsub.f32 0.5, %v400
    %v680 = vsub.f32 0.5, %v412
    %v681 = vsub.f32 0.5, %v424
    %v682 = vsub.f32 0.5, %v436
    %v683 = vsub.f32 0.5, %v448
    %v684 = vsub.f32 0.5, %v460
    %v685 = vsub.f32 0.5, %v472
    %v686 = vsub.f32 0.5, %v484
    %v687 = vmax.f32 %v671, 0.0
    %v688 = vmax.f32 %v672, 0.0
    %v689 = vmax.f32 %v673, 0.0
    %v690 = vmax.f32 %v674, 0.0
    %v691 = vmax.f32 %v675, 0.0
    %v692 = vmax.f32 %v676, 0.0
    %v693 = vmax.f32 %v677, 0.0
    %v694 = vmax.f32 %v678, 0.0
    %v695 = vmax.f32 %v679, 0.0
    %v696 = vmax.f32 %v680, 0.0
    %v697 = vmax.f32 %v681, 0.0
    %v698 = vmax.f32 %v682, 0.0
    %v699 = vmax.f32 %v683, 0.0
    %v700 = vmax.f32 %v684, 0.0
    %v701 = vmax.f32 %v685, 0.0
    %v702 = vmax.f32 %v686, 0.0
    %v703 = vsel %vm551, 0.0, %v687
    %v704 = vsel %vm552, 0.0, %v688
    %v705 = vsel %vm553, 0.0, %v689
    %v706 = vsel %vm554, 0.0, %v690
    %v707 = vsel %vm555, 0.0, %v691
    %v708 = vsel %vm556, 0.0, %v692
    %v709 = vsel %vm557, 0.0, %v693
    %v710 = vsel %vm558, 0.0, %v694
    %v711 = vsel %vm559, 0.0, %v695
    %v712 = vsel %vm560, 0.0, %v696
    %v713 = vsel %vm561, 0.0, %v697
    %v714 = vsel %vm562, 0.0, %v698
    %v715 = vsel %vm563, 0.0, %v699
    %v716 = vsel %vm564, 0.0, %v700
    %v717 = vsel %vm565, 0.0, %v701
    %v718 = vsel %vm566, 0.0, %v702
    %v719 = vld [vmem:[#allocation2] sm:$0x1]
    %v720 = vadd.f32 %v655, %v656
    %v721 = vadd.f32 %v720, %v657
    %v722 = vadd.f32 %v721, %v658
    %v723 = vadd.f32 %v722, %v659
    %v724 = vadd.f32 %v723, %v660
    %v725 = vadd.f32 %v724, %v661
    %v726 = vadd.f32 %v725, %v662
    %v727 = vadd.f32 %v726, %v663
    %v728 = vadd.f32 %v727, %v664
    %v729 = vadd.f32 %v728, %v665
    %v730 = vadd.f32 %v729, %v666
    %v731 = vadd.f32 %v730, %v667
    %v732 = vadd.f32 %v731, %v668
    %v733 = vadd.f32 %v732, %v669
    %v734 = vadd.f32 %v733, %v670
    %v735 = vrot.slane %v734, 4
    %v736 = vadd.f32 %v734, %v735
    %v737 = vrot.slane %v736, 2
    %v738 = vadd.f32 %v736, %v737
    %v739 = vrot.slane %v738, 1
    %v740 = vadd.f32 %v738, %v739
    %v741 = vadd.f32 %v719, %v740
    %742 = vst [vmem:[#allocation2] sm:$0x1] %v741
    %v743 = vld [vmem:[#allocation3] sm:$0x1]
    %vm744 = vcmp.gt.f32.partialorder %v655, 0.0
    %vm745 = vcmp.gt.f32.partialorder %v656, 0.0
    %vm746 = vcmp.gt.f32.partialorder %v657, 0.0
    %vm747 = vcmp.gt.f32.partialorder %v658, 0.0
    %vm748 = vcmp.gt.f32.partialorder %v659, 0.0
    %vm749 = vcmp.gt.f32.partialorder %v660, 0.0
    %vm750 = vcmp.gt.f32.partialorder %v661, 0.0
    %vm751 = vcmp.gt.f32.partialorder %v662, 0.0
    %vm752 = vcmp.gt.f32.partialorder %v663, 0.0
    %vm753 = vcmp.gt.f32.partialorder %v664, 0.0
    %vm754 = vcmp.gt.f32.partialorder %v665, 0.0
    %vm755 = vcmp.gt.f32.partialorder %v666, 0.0
    %vm756 = vcmp.gt.f32.partialorder %v667, 0.0
    %vm757 = vcmp.gt.f32.partialorder %v668, 0.0
    %vm758 = vcmp.gt.f32.partialorder %v669, 0.0
    %vm759 = vcmp.gt.f32.partialorder %v670, 0.0
    %v760 = vsel %vm744, 1, 0
    %v761 = vsel %vm745, 1, 0
    %v762 = vsel %vm746, 1, 0
    %v763 = vsel %vm747, 1, 0
    %v764 = vsel %vm748, 1, 0
    %v765 = vsel %vm749, 1, 0
    %v766 = vsel %vm750, 1, 0
    %v767 = vsel %vm751, 1, 0
    %v768 = vsel %vm752, 1, 0
    %v769 = vsel %vm753, 1, 0
    %v770 = vsel %vm754, 1, 0
    %v771 = vsel %vm755, 1, 0
    %v772 = vsel %vm756, 1, 0
    %v773 = vsel %vm757, 1, 0
    %v774 = vsel %vm758, 1, 0
    %v775 = vsel %vm759, 1, 0
    %v776 = vcvt.s32.f32 %v760
    %v777 = vcvt.s32.f32 %v761
    %v778 = vcvt.s32.f32 %v762
    %v779 = vcvt.s32.f32 %v763
    %v780 = vcvt.s32.f32 %v764
    %v781 = vcvt.s32.f32 %v765
    %v782 = vcvt.s32.f32 %v766
    %v783 = vcvt.s32.f32 %v767
    %v784 = vcvt.s32.f32 %v768
    %v785 = vcvt.s32.f32 %v769
    %v786 = vcvt.s32.f32 %v770
    %v787 = vcvt.s32.f32 %v771
    %v788 = vcvt.s32.f32 %v772
    %v789 = vcvt.s32.f32 %v773
    %v790 = vcvt.s32.f32 %v774
    %v791 = vcvt.s32.f32 %v775
    %v792 = vadd.f32 %v776, %v777
    %v793 = vadd.f32 %v792, %v778
    %v794 = vadd.f32 %v793, %v779
    %v795 = vadd.f32 %v794, %v780
    %v796 = vadd.f32 %v795, %v781
    %v797 = vadd.f32 %v796, %v782
    %v798 = vadd.f32 %v797, %v783
    %v799 = vadd.f32 %v798, %v784
    %v800 = vadd.f32 %v799, %v785
    %v801 = vadd.f32 %v800, %v786
    %v802 = vadd.f32 %v801, %v787
    %v803 = vadd.f32 %v802, %v788
    %v804 = vadd.f32 %v803, %v789
    %v805 = vadd.f32 %v804, %v790
    %v806 = vadd.f32 %v805, %v791
    %v807 = vrot.slane %v806, 4
    %v808 = vadd.f32 %v806, %v807
    %v809 = vrot.slane %v808, 2
    %v810 = vadd.f32 %v808, %v809
    %v811 = vrot.slane %v810, 1
    %v812 = vadd.f32 %v810, %v811
    %v813 = vadd.f32 %v743, %v812
    %814 = vst [vmem:[#allocation3] sm:$0x1] %v813
    %v815 = vld [vmem:[#allocation4] sm:$0x1]
    %v816 = vadd.f32 %v703, %v704
    %v817 = vadd.f32 %v816, %v705
    %v818 = vadd.f32 %v817, %v706
    %v819 = vadd.f32 %v818, %v707
    %v820 = vadd.f32 %v819, %v708
    %v821 = vadd.f32 %v820, %v709
    %v822 = vadd.f32 %v821, %v710
    %v823 = vadd.f32 %v822, %v711
    %v824 = vadd.f32 %v823, %v712
    %v825 = vadd.f32 %v824, %v713
    %v826 = vadd.f32 %v825, %v714
    %v827 = vadd.f32 %v826, %v715
    %v828 = vadd.f32 %v827, %v716
    %v829 = vadd.f32 %v828, %v717
    %v830 = vadd.f32 %v829, %v718
    %v831 = vrot.slane %v830, 4
    %v832 = vadd.f32 %v830, %v831
    %v833 = vrot.slane %v832, 2
    %v834 = vadd.f32 %v832, %v833
    %v835 = vrot.slane %v834, 1
    %v836 = vadd.f32 %v834, %v835
    %v837 = vadd.f32 %v815, %v836
    %838 = vst [vmem:[#allocation4] sm:$0x1] %v837
    %v839 = vld [vmem:[#allocation5] sm:$0x1]
    %vm840 = vcmp.gt.f32.partialorder %v703, 0.0
    %vm841 = vcmp.gt.f32.partialorder %v704, 0.0
    %vm842 = vcmp.gt.f32.partialorder %v705, 0.0
    %vm843 = vcmp.gt.f32.partialorder %v706, 0.0
    %vm844 = vcmp.gt.f32.partialorder %v707, 0.0
    %vm845 = vcmp.gt.f32.partialorder %v708, 0.0
    %vm846 = vcmp.gt.f32.partialorder %v709, 0.0
    %vm847 = vcmp.gt.f32.partialorder %v710, 0.0
    %vm848 = vcmp.gt.f32.partialorder %v711, 0.0
    %vm849 = vcmp.gt.f32.partialorder %v712, 0.0
    %vm850 = vcmp.gt.f32.partialorder %v713, 0.0
    %vm851 = vcmp.gt.f32.partialorder %v714, 0.0
    %vm852 = vcmp.gt.f32.partialorder %v715, 0.0
    %vm853 = vcmp.gt.f32.partialorder %v716, 0.0
    %vm854 = vcmp.gt.f32.partialorder %v717, 0.0
    %vm855 = vcmp.gt.f32.partialorder %v718, 0.0
    %v856 = vsel %vm840, 1, 0
    %v857 = vsel %vm841, 1, 0
    %v858 = vsel %vm842, 1, 0
    %v859 = vsel %vm843, 1, 0
    %v860 = vsel %vm844, 1, 0
    %v861 = vsel %vm845, 1, 0
    %v862 = vsel %vm846, 1, 0
    %v863 = vsel %vm847, 1, 0
    %v864 = vsel %vm848, 1, 0
    %v865 = vsel %vm849, 1, 0
    %v866 = vsel %vm850, 1, 0
    %v867 = vsel %vm851, 1, 0
    %v868 = vsel %vm852, 1, 0
    %v869 = vsel %vm853, 1, 0
    %v870 = vsel %vm854, 1, 0
    %v871 = vsel %vm855, 1, 0
    %v872 = vcvt.s32.f32 %v856
    %v873 = vcvt.s32.f32 %v857
    %v874 = vcvt.s32.f32 %v858
    %v875 = vcvt.s32.f32 %v859
    %v876 = vcvt.s32.f32 %v860
    %v877 = vcvt.s32.f32 %v861
    %v878 = vcvt.s32.f32 %v862
    %v879 = vcvt.s32.f32 %v863
    %v880 = vcvt.s32.f32 %v864
    %v881 = vcvt.s32.f32 %v865
    %v882 = vcvt.s32.f32 %v866
    %v883 = vcvt.s32.f32 %v867
    %v884 = vcvt.s32.f32 %v868
    %v885 = vcvt.s32.f32 %v869
    %v886 = vcvt.s32.f32 %v870
    %v887 = vcvt.s32.f32 %v871
    %v888 = vadd.f32 %v872, %v873
    %v889 = vadd.f32 %v888, %v874
    %v890 = vadd.f32 %v889, %v875
    %v891 = vadd.f32 %v890, %v876
    %v892 = vadd.f32 %v891, %v877
    %v893 = vadd.f32 %v892, %v878
    %v894 = vadd.f32 %v893, %v879
    %v895 = vadd.f32 %v894, %v880
    %v896 = vadd.f32 %v895, %v881
    %v897 = vadd.f32 %v896, %v882
    %v898 = vadd.f32 %v897, %v883
    %v899 = vadd.f32 %v898, %v884
    %v900 = vadd.f32 %v899, %v885
    %v901 = vadd.f32 %v900, %v886
    %v902 = vadd.f32 %v901, %v887
    %v903 = vrot.slane %v902, 4
    %v904 = vadd.f32 %v902, %v903
    %v905 = vrot.slane %v904, 2
    %v906 = vadd.f32 %v904, %v905
    %v907 = vrot.slane %v906, 1
    %v908 = vadd.f32 %v906, %v907
    %v909 = vadd.f32 %v839, %v908
    %910 = vst [vmem:[#allocation5] sm:$0x1] %v909
    // Predicated region
    $region30: #{tpu_custom_call.1} parent=1 // pred_check
      %p911 = pneg %p24
    $region31: #{tpu_custom_call.1} parent=1 // pred_check_branch
      %913 = sbr.rel (%p911) target = $region33
    $region32: #{tpu_custom_call.1} parent=1 // pred_region
      %v914 = vld [vmem:[#allocation2] sm:$0x1]
      %vm915 = vcmask 1040384
      %v916 = vsel %vm915, %v914, 0.0
      %917 = vadd.xlane.f32.xlu0 %v916
      %v918 = vpop.xlane.xlu0 %917
      %v919 = vrot.slane %v918, 4
      %v920 = vadd.f32 %v918, %v919
      %v921 = vrot.slane %v920, 2
      %v922 = vadd.f32 %v920, %v921
      %v923 = vrot.slane %v922, 1
      %v924 = vadd.f32 %v922, %v923
      %s925 = vtos %v924
      %v926 = vld [vmem:[#allocation3] sm:$0x1]
      %v927 = vsel %vm915, %v926, 0.0
      %928 = vadd.xlane.f32.xlu0 %v927
      %v929 = vpop.xlane.xlu0 %928
      %v930 = vrot.slane %v929, 4
      %v931 = vadd.f32 %v929, %v930
      %v932 = vrot.slane %v931, 2
      %v933 = vadd.f32 %v931, %v932
      %v934 = vrot.slane %v933, 1
      %v935 = vadd.f32 %v933, %v934
      %s936 = vtos %v935
      %v937 = vld [vmem:[#allocation4] sm:$0x1]
      %v938 = vsel %vm915, %v937, 0.0
      %939 = vadd.xlane.f32.xlu0 %v938
      %v940 = vpop.xlane.xlu0 %939
      %v941 = vrot.slane %v940, 4
      %v942 = vadd.f32 %v940, %v941
      %v943 = vrot.slane %v942, 2
      %v944 = vadd.f32 %v942, %v943
      %v945 = vrot.slane %v944, 1
      %v946 = vadd.f32 %v944, %v945
      %s947 = vtos %v946
      %v948 = vld [vmem:[#allocation5] sm:$0x1]
      %v949 = vsel %vm915, %v948, 0.0
      %950 = vadd.xlane.f32.xlu0 %v949
      %v951 = vpop.xlane.xlu0 %950
      %v952 = vrot.slane %v951, 4
      %v953 = vadd.f32 %v951, %v952
      %v954 = vrot.slane %v953, 2
      %v955 = vadd.f32 %v953, %v954
      %v956 = vrot.slane %v955, 1
      %v957 = vadd.f32 %v955, %v956
      %s958 = vtos %v957
      %vm959 = vcmp.eq.s32.totalorder %v569, 0
      %v960 = vstv %s925
      %v961 = vsel %vm959, %v960, 0.0
      %vm962 = vcmp.eq.s32.totalorder %v569, 1
      %v963 = vstv %s936
      %v964 = vsel %vm962, %v963, 0.0
      %v965 = vadd.f32 %v961, %v964
      %vm966 = vcmp.eq.s32.totalorder %v569, 2
      %v967 = vstv %s947
      %v968 = vsel %vm966, %v967, 0.0
      %v969 = vadd.f32 %v965, %v968
      %vm970 = vcmp.eq.s32.totalorder %v569, 3
      %v971 = vstv %s958
      %v972 = vsel %vm970, %v971, 0.0
      %v973 = vadd.f32 %v969, %v972
      %974 = vst [vmem:[#allocation6] sm:$0xf] %v973
    $region33: #{tpu_custom_call.1} parent=1 // pred_fallthru
      _
    // Predicated region
    $region34: #{tpu_custom_call.1} parent=1 // pred_check
      _
    $region35: #{tpu_custom_call.1} parent=1 // pred_check_branch
      %976 = sbr.rel (0) target = $region37
    $region36: #{tpu_custom_call.1} parent=1 // pred_region
      %978 = vsyncadd [#allocation7], 0
      %s980 = sshll.u32 [#allocation6], 4
      %s981 = int_to_ptr.vmem [resolvable:$true] %s980
      %s982 = sshll.u32 %s6, 4
      %s983 = int_to_ptr.hbm [resolvable:$true] %s982
      %985 = dma.vmem_to_hbm [thread:$0]  %s981, 64, %s983, [#allocation7]
    $region37: #{tpu_custom_call.1} parent=1 // pred_fallthru
      _
    // Predicated region
    $region38: #{tpu_custom_call.1} parent=1 // pred_check
      _
    $region39: #{tpu_custom_call.1} parent=1 // pred_check_branch
      %987 = sbr.rel (0) target = $region41
    $region40: #{tpu_custom_call.1} parent=1 // pred_region
      %989 = dma.done [#allocation7], 64
    $region41: #{tpu_custom_call.1} parent=1 // pred_fallthru
      _
    %990 = vsyncpa [#allocation7], 1

</llo_original>
